<compile_context>
chip_gen: v6e
topology: v6e:2x2x1
jax: 0.10.0
libtpu: 0.0.40
codegen_flags: <defaults>
</compile_context>

<pallas_src>
import math
import functools

import jax
import jax.numpy as jnp
from jax.experimental import pallas as pl
from jax.experimental.pallas import tpu as pltpu


# ----------------------------------------------------------------------------
# PE table (glue, plain JAX) -- mirrors the PyTorch buffer exactly.
# ----------------------------------------------------------------------------
def make_positional_encoding(d_model: int, max_len: int = 5000) -> jnp.ndarray:
    """Returns pe of shape [max_len, d_model], identical to the torch buffer."""
    position = jnp.arange(max_len, dtype=jnp.float32)[:, None]            # [L,1]
    div_term = jnp.exp(
        jnp.arange(0, d_model, 2, dtype=jnp.float32)
        * (-math.log(10000.0) / d_model)
    )                                                                      # [D/2]
    pe = jnp.zeros((max_len, d_model), dtype=jnp.float32)
    pe = pe.at[:, 0::2].set(jnp.sin(position * div_term))
    pe = pe.at[:, 1::2].set(jnp.cos(position * div_term))
    return pe


# ----------------------------------------------------------------------------
# Tiling helpers
# ----------------------------------------------------------------------------
def _pipeline_budget_bytes() -> int:
    """Generation-aware budget for double-buffered pipeline tiles."""
    try:
        cap = int(pltpu.get_tpu_info().vmem_capacity_bytes)
        # v5e/v6e (128 MiB) -> 24 MiB of buffers; v7x (64 MiB/TC) -> 16 MiB.
        return max(8 << 20, min(24 << 20, cap // 4))
    except Exception:
        return 16 << 20


def _sublane_multiple(itemsize: int) -> int:
    # 8 rows/vreg for 32-bit, 16 for bf16, 32 for int8/fp8 (packed sublanes).
    return max(8, 32 // max(itemsize, 1))


# ----------------------------------------------------------------------------
# Dropout hash (stateless, portable): murmur3 fmix32 finalizer.
# ----------------------------------------------------------------------------
def _fmix32(h):
    sr = jax.lax.shift_right_logical
    h = h * jnp.uint32(0x9E3779B1)
    h = h ^ sr(h, jnp.uint32(16))
    h = h * jnp.uint32(0x85EBCA6B)
    h = h ^ sr(h, jnp.uint32(13))
    h = h * jnp.uint32(0xC2B2AE35)
    h = h ^ sr(h, jnp.uint32(16))
    return h


def _keep_mask(flat_u32, seed_u32, thresh31: int):
    """keep with prob ~ thresh31 / 2^31 (signed compare on masked hash)."""
    h = _fmix32(flat_u32 ^ seed_u32)
    h31 = (h & jnp.uint32(0x7FFFFFFF)).astype(jnp.int32)
    return h31 < jnp.int32(thresh31)


def _iota_u32(shape, dim):
    # int32 iota (guaranteed Mosaic support) then reinterpret as uint32.
    return jax.lax.broadcasted_iota(jnp.int32, shape, dim).astype(jnp.uint32)


# ----------------------------------------------------------------------------
# Pallas kernels
# ----------------------------------------------------------------------------
def _add_kernel(x_ref, pe_ref, o_ref):
    # Works for both tile layouts:
    #   tiled path:   x (TM, D)       + pe (TM, D)
    #   batched path: x (Bt, S, D)    + pe (S, D)   (broadcast)
    y = x_ref[...].astype(jnp.float32) + pe_ref[...]
    o_ref[...] = y.astype(o_ref.dtype)


def _add_dropout_batched_kernel(seed_ref, x_ref, pe_ref, o_ref, *,
                                thresh31, scale, b_tile, s_eff, d_eff):
    shape = x_ref.shape                                   # (b_tile, s_eff, d_eff)
    seed_u = seed_ref[0].astype(jnp.uint32)
    b0 = (pl.program_id(0) * b_tile).astype(jnp.uint32)
    bi = _iota_u32(shape, 0) + b0
    ri = _iota_u32(shape, 1)
    ci = _iota_u32(shape, 2)
    flat = (bi * jnp.uint32(s_eff) + ri) * jnp.uint32(d_eff) + ci
    keep = _keep_mask(flat, seed_u, thresh31)

    y = x_ref[...].astype(jnp.float32) + pe_ref[...]
    out = jnp.where(keep, y * jnp.float32(scale), jnp.zeros_like(y))
    o_ref[...] = out.astype(o_ref.dtype)


def _add_dropout_tiled_kernel(seed_ref, x_ref, pe_ref, o_ref, *,
                              thresh31, scale, tm, s_eff, d_eff):
    shape = x_ref.shape                                   # (tm, d_eff)
    seed_u = seed_ref[0].astype(jnp.uint32)
    r0 = (pl.program_id(0) * tm).astype(jnp.uint32)
    b = pl.program_id(1).astype(jnp.uint32)
    ri = _iota_u32(shape, 0) + r0
    ci = _iota_u32(shape, 1)
    flat = (b * jnp.uint32(s_eff) + ri) * jnp.uint32(d_eff) + ci
    keep = _keep_mask(flat, seed_u, thresh31)

    y = x_ref[...].astype(jnp.float32) + pe_ref[...]
    out = jnp.where(keep, y * jnp.float32(scale), jnp.zeros_like(y))
    o_ref[...] = out.astype(o_ref.dtype)


# ----------------------------------------------------------------------------
# Wrapper
# ----------------------------------------------------------------------------
def positional_encoding_forward(
    x: jnp.ndarray,
    pe_full: jnp.ndarray,
    *,
    dropout_p: float = 0.1,
    training: bool = False,
    seed: int = 0,
) -> jnp.ndarray:
    """x: [B, S, D] (f32 or bf16).  pe_full: [max_len, D] f32."""
    B, S, D = x.shape
    max_len = pe_full.shape[0]
    if S > max_len:
        raise ValueError(f"seq_len {S} exceeds positional-encoding max_len {max_len}")
    pe = pe_full[:S, :].astype(jnp.float32)                # [S, D] (glue slice)

    # ---- Lane-dense regrouping: make the last (lane) dim a multiple of 128 ----
    g = 1
    if D % 128 != 0:
        cand = 128 // math.gcd(D, 128)
        if S % cand == 0:
            g = cand
        # TODO(synk): for S not divisible by g, pad D to a 128 multiple instead.
    S_eff, D_eff = S // g, D * g
    x_eff = x.reshape(B, S_eff, D_eff)
    pe_eff = pe.reshape(S_eff, D_eff)

    itemsize = jnp.dtype(x.dtype).itemsize
    sub = _sublane_multiple(itemsize)
    budget = _pipeline_budget_bytes()
    vmem_limit = 32 << 20        # safe on all gens; raises v5e's 16 MiB default

    # Rows (of D_eff elems) fitting the pipeline set:
    #   x (2 bufs) + out (2 bufs) in x dtype, pe (2 bufs) in f32.
    bytes_per_row = D_eff * (4 * itemsize + 8)
    rows = budget // max(bytes_per_row, 1)
    rows = max(sub, min(1024, (rows // sub) * sub))

    use_dropout = training and dropout_p > 0.0
    if use_dropout:
        keep_prob = 1.0 - float(dropout_p)
        thresh31 = min(int(keep_prob * 2147483648.0), 2147483647)
        scale = 1.0 / keep_prob
        seed_arr = jnp.array([seed], dtype=jnp.int32)

    out_shape = jax.ShapeDtypeStruct((B, S_eff, D_eff), x.dtype)

    if S_eff <= rows:
        # ---- Batched-tile path: fold B_tile batch rows per grid step ----
        pe_bytes = S_eff * D_eff * 4 * 2
        per_b = S_eff * D_eff * itemsize * 4
        b_tile = int(max(1, min(B, (budget - pe_bytes) // max(per_b, 1))))
        grid = (pl.cdiv(B, b_tile),)
        cparams = pltpu.CompilerParams(
            dimension_semantics=("parallel",), vmem_limit_bytes=vmem_limit)

        if not use_dropout:
            out = pl.pallas_call(
                _add_kernel,
                out_shape=out_shape,
                grid_spec=pltpu.PrefetchScalarGridSpec(
                    num_scalar_prefetch=0, grid=grid,
                    in_specs=[
                        pl.BlockSpec((b_tile, S_eff, D_eff), lambda b: (b, 0, 0)),
                        pl.BlockSpec((S_eff, D_eff), lambda b: (0, 0)),
                    ],
                    out_specs=pl.BlockSpec((b_tile, S_eff, D_eff),
                                           lambda b: (b, 0, 0))),
                compiler_params=cparams,
            )(x_eff, pe_eff)
        else:
            kern = functools.partial(_add_dropout_batched_kernel,
                                     thresh31=thresh31, scale=scale,
                                     b_tile=b_tile, s_eff=S_eff, d_eff=D_eff)
            out = pl.pallas_call(
                kern,
                out_shape=out_shape,
                grid_spec=pltpu.PrefetchScalarGridSpec(
                    num_scalar_prefetch=1, grid=grid,
                    in_specs=[
                        pl.BlockSpec((b_tile, S_eff, D_eff),
                                     lambda b, sd: (b, 0, 0)),
                        pl.BlockSpec((S_eff, D_eff), lambda b, sd: (0, 0)),
                    ],
                    out_specs=pl.BlockSpec((b_tile, S_eff, D_eff),
                                           lambda b, sd: (b, 0, 0))),
                compiler_params=cparams,
            )(seed_arr, x_eff, pe_eff)
    else:
        # ---- Seq-tiled path: s-outer / b-inner, batch dim squeezed ----
        tm = rows                           # multiple of `sub`; ragged last tile OK
        grid = (pl.cdiv(S_eff, tm), B)
        cparams = pltpu.CompilerParams(
            dimension_semantics=("parallel", "parallel"),
            vmem_limit_bytes=vmem_limit)

        if not use_dropout:
            out = pl.pallas_call(
                _add_kernel,
                out_shape=out_shape,
                grid_spec=pltpu.PrefetchScalarGridSpec(
                    num_scalar_prefetch=0, grid=grid,
                    in_specs=[
                        pl.BlockSpec((None, tm, D_eff), lambda s, b: (b, s, 0)),
                        pl.BlockSpec((tm, D_eff), lambda s, b: (s, 0)),
                    ],
                    out_specs=pl.BlockSpec((None, tm, D_eff),
                                           lambda s, b: (b, s, 0))),
                compiler_params=cparams,
            )(x_eff, pe_eff)
        else:
            kern = functools.partial(_add_dropout_tiled_kernel,
                                     thresh31=thresh31, scale=scale,
                                     tm=tm, s_eff=S_eff, d_eff=D_eff)
            out = pl.pallas_call(
                kern,
                out_shape=out_shape,
                grid_spec=pltpu.PrefetchScalarGridSpec(
                    num_scalar_prefetch=1, grid=grid,
                    in_specs=[
                        pl.BlockSpec((None, tm, D_eff),
                                     lambda s, b, sd: (b, s, 0)),
                        pl.BlockSpec((tm, D_eff), lambda s, b, sd: (s, 0)),
                    ],
                    out_specs=pl.BlockSpec((None, tm, D_eff),
                                           lambda s, b, sd: (b, s, 0))),
                compiler_params=cparams,
            )(seed_arr, x_eff, pe_eff)

    return out.reshape(B, S, D) if g > 1 else out


# ----------------------------------------------------------------------------
# Main
# ----------------------------------------------------------------------------
if __name__ == "__main__":
    B, S, D = 2, 8, 32
    MAX_LEN = 64          # module default is 5000; small for the demo
    P = 0.1

    key = jax.random.PRNGKey(0)
    x = jax.random.normal(key, (B, S, D), dtype=jnp.float32)
    pe_full = make_positional_encoding(D, max_len=MAX_LEN)

    # Eval-mode forward (dropout = identity).
    out = positional_encoding_forward(x, pe_full, dropout_p=P, training=False)
    out = jax.block_until_ready(out)
    ref = x + pe_full[None, :S, :]
    assert out.shape == (B, S, D)
    assert jnp.allclose(out, ref, atol=1e-6, rtol=1e-6)

    # Training-mode forward: every element must be 0 (dropped) or
    # (x + pe) / (1 - p) (kept, inverted-dropout rescale).
    out_train = positional_encoding_forward(
        x, pe_full, dropout_p=P, training=True, seed=123
    )
    out_train = jax.block_until_ready(out_train)
    assert out_train.shape == (B, S, D)
    scaled = ref / (1.0 - P)
    ok = jnp.isclose(out_train, scaled, atol=1e-5, rtol=1e-5) | (out_train == 0.0)
    assert bool(jnp.all(ok))

    print("KERNEL_OK")
</pallas_src>

<mosaic_0001>
module attributes {stable_mosaic.version = 11 : i64} {
  func.func @_add_kernel(%arg0: i32, %arg1: memref<2x2x128xf32, #tpu.memory_space<vmem>>, %arg2: memref<2x128xf32, #tpu.memory_space<vmem>>, %arg3: memref<2x2x128xf32, #tpu.memory_space<vmem>>) attributes {dimension_semantics = [#tpu.dimension_semantics<parallel>], iteration_bounds = array<i64: 1>, scalar_prefetch = 0 : i64, scratch_operands = 0 : i64, tpu.core_type = #tpu.core_type<tc>, window_params = [{transform_indices = @transform_0, window_bounds = array<i64: 2, 2, 128>}, {pipeline_mode = #tpu.pipeline_mode<synchronous>, transform_indices = @transform_1, window_bounds = array<i64: 2, 128>}, {transform_indices = @transform_2, window_bounds = array<i64: 2, 2, 128>}]} {
    %c0 = arith.constant 0 : index
    %c0_0 = arith.constant 0 : index
    %c0_1 = arith.constant 0 : index
    %0 = vector.load %arg1[%c0, %c0_0, %c0_1] : memref<2x2x128xf32, #tpu.memory_space<vmem>>, vector<2x2x128xf32>
    %c0_2 = arith.constant 0 : index
    %c0_3 = arith.constant 0 : index
    %1 = vector.load %arg2[%c0_2, %c0_3] : memref<2x128xf32, #tpu.memory_space<vmem>>, vector<2x128xf32>
    %2 = vector.shape_cast %1 : vector<2x128xf32> to vector<1x2x128xf32>
    %3 = vector.broadcast %2 : vector<1x2x128xf32> to vector<2x2x128xf32>
    %4 = arith.addf %0, %3 : vector<2x2x128xf32>
    %c0_4 = arith.constant 0 : index
    %c0_5 = arith.constant 0 : index
    %c0_6 = arith.constant 0 : index
    %5 = vector.load %arg3[%c0_4, %c0_5, %c0_6] : memref<2x2x128xf32, #tpu.memory_space<vmem>>, vector<2x2x128xf32>
    tpu.vector_store %arg3[%c0_4, %c0_5, %c0_6], %4 {strides = array<i32>} : memref<2x2x128xf32, #tpu.memory_space<vmem>>, vector<2x2x128xf32>,
    return
  }
  func.func @transform_0(%arg0: i32) -> (i32, i32, i32) {
    %c0_i32 = arith.constant 0 : i32
    %c0_i32_0 = arith.constant 0 : i32
    %c0_i32_1 = arith.constant 0 : i32
    return %arg0, %c0_i32, %c0_i32_0 : i32, i32, i32
  }
  func.func @transform_1(%arg0: i32) -> (i32, i32) {
    %c0_i32 = arith.constant 0 : i32
    %c0_i32_0 = arith.constant 0 : i32
    %c0_i32_1 = arith.constant 0 : i32
    return %c0_i32, %c0_i32_0 : i32, i32
  }
  func.func @transform_2(%arg0: i32) -> (i32, i32, i32) {
    %c0_i32 = arith.constant 0 : i32
    %c0_i32_0 = arith.constant 0 : i32
    %c0_i32_1 = arith.constant 0 : i32
    return %arg0, %c0_i32, %c0_i32_0 : i32, i32, i32
  }
}

</mosaic_0001>

<llo_original>
// kernel: tpu_custom_call.1
$region0: #{tpu_custom_call.1}
  #allocation0 [shape = 'u32[]', space=smem, size = 0x4, offset = 0x4, fixed_abs, tag = 'smem constant byte address 0x4 - core index']
  #allocation1 [shape = 'u32[144,128]{1,0:T(1,128)}', space=vmem, size = 0x12000, scoped, tag = 'internal scratch']
  %s0 = inlined_call_operand.hbm [shape: f32[2,2,128], index: 0, kind: input, shape index: {}]
  %s1 = inlined_call_operand.hbm [shape: f32[2,128], index: 1, kind: input, shape index: {}]
  %s2 = inlined_call_operand.hbm [shape: f32[2,2,128], index: 2, kind: output, shape index: {}]
  %s3 = sld [smem:[#allocation0]]
  $region26: #{tpu_custom_call.1} parent=0
    _
  %s5 = ssub.s32 1, %s3
  %s6 = scalar_select 0, %s5, %s3
  $region1: #{tpu_custom_call.1} parent=0
    #allocation2 [shape = 'u8[2048]{0}', space=vmem, size = 0x800, scoped, tag = 'input window, operand 0, single buffered']
    #allocation3 [shape = 's32[1]{0}', space=sflag, size = 0x4, scoped, tag = 'scoped memory for tpu_custom_call.1']
    #allocation4 [shape = 's32[1]{0}', space=sflag, size = 0x4, scoped, tag = 'scoped memory for tpu_custom_call.1']
    #allocation5 [shape = 'u8[1024]{0}', space=vmem, size = 0x400, scoped, tag = 'input window, operand 1, single buffered']
    #allocation6 [shape = 's32[1]{0}', space=sflag, size = 0x4, scoped, tag = 'scoped memory for tpu_custom_call.1']
    #allocation7 [shape = 'u8[2048]{0}', space=vmem, size = 0x800, scoped, tag = 'output window, operand 0, single buffered']
    %7 = vsyncpa [#allocation3], 0
    %8 = vsyncpa [#allocation6], 0
    %9 = vsyncpa [#allocation4], 0
    // Predicated region
    $region2: #{tpu_custom_call.1} parent=1 // pred_check
      _
    $region3: #{tpu_custom_call.1} parent=1 // pred_check_branch
      %11 = sbr.rel (0) target = $region5
    $region4: #{tpu_custom_call.1} parent=1 // pred_region
      %s13 = ssub.s32 64, 64
      %14 = vsyncadd [#allocation3], %s13
      %s15 = sshll.u32 [#allocation2], 4
      %s16 = int_to_ptr.vmem [resolvable:$true] %s15
      %21 = dma.hbm_to_vmem [thread:$0]  %s0, 64, %s16, [#allocation3], 32, 32, 2
    $region5: #{tpu_custom_call.1} parent=1 // pred_fallthru
      _
    // Predicated region
    $region6: #{tpu_custom_call.1} parent=1 // pred_check
      _
    $region7: #{tpu_custom_call.1} parent=1 // pred_check_branch
      %23 = sbr.rel (0) target = $region9
    $region8: #{tpu_custom_call.1} parent=1 // pred_region
      %s25 = ssub.s32 32, 32
      %26 = vsyncadd [#allocation6], %s25
      %s28 = sshll.u32 [#allocation5], 4
      %s29 = int_to_ptr.vmem [resolvable:$true] %s28
      %31 = dma.hbm_to_vmem [thread:$0]  %s1, 32, %s29, [#allocation6]
    $region9: #{tpu_custom_call.1} parent=1 // pred_fallthru
      _
    // Predicated region
    $region10: #{tpu_custom_call.1} parent=1 // pred_check
      _
    $region11: #{tpu_custom_call.1} parent=1 // pred_check_branch
      %33 = sbr.rel (0) target = $region13
    $region12: #{tpu_custom_call.1} parent=1 // pred_region
      %34 = dma.done [#allocation3], 64
    $region13: #{tpu_custom_call.1} parent=1 // pred_fallthru
      _
    // Predicated region
    $region14: #{tpu_custom_call.1} parent=1 // pred_check
      _
    $region15: #{tpu_custom_call.1} parent=1 // pred_check_branch
      %36 = sbr.rel (0) target = $region17
    $region16: #{tpu_custom_call.1} parent=1 // pred_region
      %37 = dma.done [#allocation6], 32
    $region17: #{tpu_custom_call.1} parent=1 // pred_fallthru
      _
    %v38 = vld [vmem:[#allocation2] sm:$0x3]
    %v39 = vld [vmem:[#allocation2 + $0x2] sm:$0x3]
    %v40 = vld [vmem:[#allocation5] sm:$0x3]
    %v41 = vadd.f32 %v38, %v40
    %v42 = vadd.f32 %v39, %v40
    %43 = vst [vmem:[#allocation7] sm:$0x3] %v41
    %44 = vst [vmem:[#allocation7 + $0x2] sm:$0x3] %v42
    // Predicated region
    $region18: #{tpu_custom_call.1} parent=1 // pred_check
      _
    $region19: #{tpu_custom_call.1} parent=1 // pred_check_branch
      %46 = sbr.rel (0) target = $region21
    $region20: #{tpu_custom_call.1} parent=1 // pred_region
      %s48 = ssub.s32 64, 64
      %49 = vsyncadd [#allocation4], %s48
      %s50 = sshll.u32 [#allocation7], 4
      %s51 = int_to_ptr.vmem [resolvable:$true] %s50
      %56 = dma.vmem_to_hbm [thread:$0]  %s51, 64, %s2, [#allocation4], 32, 32, 2
    $region21: #{tpu_custom_call.1} parent=1 // pred_fallthru
      _
    // Predicated region
    $region22: #{tpu_custom_call.1} parent=1 // pred_check
      _
    $region23: #{tpu_custom_call.1} parent=1 // pred_check_branch
      %58 = sbr.rel (0) target = $region25
    $region24: #{tpu_custom_call.1} parent=1 // pred_region
      %59 = dma.done [#allocation4], 64
    $region25: #{tpu_custom_call.1} parent=1 // pred_fallthru
      _
    %60 = vsyncpa [#allocation3], 1
    %61 = vsyncpa [#allocation6], 1
    %62 = vsyncpa [#allocation4], 1

</llo_original>
